<compile_context>
chip_gen: v7x
topology: tpu7x:2x2x1
jax: 0.10.0
libtpu: 0.0.40
codegen_flags: <defaults>
</compile_context>

<pallas_src>
import jax
import jax.numpy as jnp
from jax.experimental import pallas as pl
from jax.experimental.pallas import tpu as pltpu

LANE = 128
ALIGN = 16          # sublane alignment valid for both f32 (8) and packed bf16 (16)
MiB = 1024 * 1024


def _round_up(x, m):
    return (x + m - 1) // m * m


def _vmem_cap_bytes():
    """Generation-aware VMEM budget: ~80% of physical VMEM, capped at 110 MiB.
    v7x (64 MiB physical) -> ~51 MiB; v5e/v6e (128 MiB) -> ~102 MiB."""
    cap = None
    try:
        info = pltpu.get_tpu_info()
        cap = getattr(info, "vmem_capacity_bytes", None)
    except Exception:
        cap = None
    if not cap:
        cap = 64 * MiB  # conservative fallback: smallest (v7x) part
    return min(int(cap) * 4 // 5, 110 * MiB)


def _make_discriminator_kernel(num_hidden_layers: int, negative_slope: float):
    """Fused kernel: `num_hidden_layers` (Linear + LeakyReLU) blocks then the logit
    Linear.  MXU matmuls with bf16 operands / f32 accumulation; epilogues in f32."""

    def kernel(*refs):
        # refs layout:
        #   x_ref (bf16),
        #   (w_i (bf16), b_i (f32)) for each hidden layer,
        #   w_logit (bf16, lane-padded), b_logit (f32, lane-padded),
        #   logits_ref, rep_ref
        x_ref = refs[0]
        hidden_refs = refs[1:1 + 2 * num_hidden_layers]
        w_log_ref = refs[1 + 2 * num_hidden_layers]
        b_log_ref = refs[2 + 2 * num_hidden_layers]
        logits_ref = refs[3 + 2 * num_hidden_layers]
        rep_ref = refs[4 + 2 * num_hidden_layers]

        h = x_ref[...]                                  # bf16, fed straight to MXU
        for i in range(num_hidden_layers):
            w = hidden_refs[2 * i][...]                 # (in, out)  bf16
            b = hidden_refs[2 * i + 1][...]             # (1, out)   f32 (broadcasts)
            h = jnp.dot(h.astype(jnp.bfloat16), w,
                        preferred_element_type=jnp.float32) + b
            # LeakyReLU(slope in (0,1)) == max(h, slope*h): 1 vmul + 1 vmax.
            h = jnp.maximum(h, negative_slope * h)

        rep_ref[...] = h.astype(rep_ref.dtype)
        logits = jnp.dot(h.astype(jnp.bfloat16), w_log_ref[...],
                         preferred_element_type=jnp.float32) + b_log_ref[...]
        logits_ref[...] = logits.astype(logits_ref.dtype)

    return kernel


def discriminator_forward(x, hidden_params, logit_params,
                          negative_slope=0.2, tile_b=None,
                          out_dtype=jnp.bfloat16):
    """x: (B, input_size)
       hidden_params: list of (W (in,out), b (1,out)) for each hidden Linear
       logit_params: (W (hidden, num_labels+1), b (1, num_labels+1))
       returns (logits (B, num_labels+1), last_rep (B, hidden)) in `out_dtype`."""
    B, d_in = x.shape
    n_hidden = len(hidden_params)
    dims = [d_in] + [w.shape[1] for w, _ in hidden_params]
    last_hidden = dims[-1]
    n_out = logit_params[0].shape[1]
    n_out_pad = _round_up(max(n_out, LANE), LANE)        # lane-dense logits on MXU
    out_bytes = jnp.dtype(out_dtype).itemsize

    # Resident weights (bf16) + biases (f32), logit weight/bias padded to 128 cols.
    weight_bytes = (sum(int(w.size) * 2 + int(b.size) * 4 for w, b in hidden_params)
                    + last_hidden * n_out_pad * 2 + n_out_pad * 4)
    max_width = max(dims + [n_out_pad])

    def vmem_needed(tile):
        # Double-buffered streamed tiles: bf16 x in; out_dtype logits/rep out.
        stream = 2 * tile * (d_in * 2 + (n_out_pad + last_hidden) * out_bytes)
        # Compiler scratch for the fused, unrolled chain (~3 f32 + 1 bf16 live copies).
        scratch = tile * max_width * (3 * 4 + 2)
        # Weights are double-buffered by the pipeliner even with constant index maps.
        return stream + 2 * weight_bytes + scratch + 4 * MiB

    vmem_cap = _vmem_cap_bytes()

    # Batch tiling: big tiles to amortize ~0.35us/step overhead, generation-aware.
    if tile_b is None:
        tile_b = 1024 if vmem_cap >= 96 * MiB else 512

    b_al = _round_up(B, ALIGN)
    tile_b = max(ALIGN, _round_up(min(tile_b, b_al), ALIGN))
    # Keep >= 2 grid steps when possible so "parallel" can use both v7x TensorCores.
    while tile_b > ALIGN and pl.cdiv(b_al, tile_b) < 2:
        tile_b = max(ALIGN, _round_up(tile_b // 2, ALIGN))
    # Shrink the tile until it fits the generation's VMEM budget.
    while tile_b > ALIGN and vmem_needed(tile_b) > vmem_cap:
        tile_b = max(ALIGN, _round_up(tile_b // 2, ALIGN))

    b_pad = _round_up(b_al, tile_b)
    grid = (b_pad // tile_b,)

    # Input streamed as bf16 (halves input DMA); padded batch rows are sliced off.
    x_p = x.astype(jnp.bfloat16)
    if b_pad != B:
        x_p = jnp.pad(x_p, ((0, b_pad - B), (0, 0)))

    # Pad logit weight/bias to lane-dense 128 cols (zero cols -> sliced off after).
    w_log, b_log = logit_params
    w_log_p = jnp.pad(w_log.astype(jnp.bfloat16), ((0, 0), (0, n_out_pad - n_out)))
    b_log_p = jnp.pad(b_log.astype(jnp.float32), ((0, 0), (0, n_out_pad - n_out)))

    flat_inputs = [x_p]
    in_specs = [pl.BlockSpec((tile_b, d_in), lambda i: (i, 0))]
    for w, b in hidden_params:
        flat_inputs += [w.astype(jnp.bfloat16), b.astype(jnp.float32)]
        # Constant block index -> weights/biases stay VMEM-resident across grid steps.
        in_specs += [pl.BlockSpec(w.shape, lambda i: (0, 0)),
                     pl.BlockSpec(b.shape, lambda i: (0, 0))]
    flat_inputs += [w_log_p, b_log_p]
    in_specs += [pl.BlockSpec(w_log_p.shape, lambda i: (0, 0)),
                 pl.BlockSpec(b_log_p.shape, lambda i: (0, 0))]

    out_specs = (pl.BlockSpec((tile_b, n_out_pad), lambda i: (i, 0)),
                 pl.BlockSpec((tile_b, last_hidden), lambda i: (i, 0)))
    out_shape = (jax.ShapeDtypeStruct((b_pad, n_out_pad), out_dtype),
                 jax.ShapeDtypeStruct((b_pad, last_hidden), out_dtype))

    # Advisory cost estimate for XLA scheduling.
    flops = sum(2 * b_pad * dims[i] * dims[i + 1] for i in range(len(dims) - 1))
    flops += 2 * b_pad * last_hidden * n_out_pad
    bytes_accessed = (b_pad * d_in * 2 + weight_bytes
                      + b_pad * (n_out_pad + last_hidden) * out_bytes)
    cost = pl.CostEstimate(flops=int(flops), transcendentals=0,
                           bytes_accessed=int(bytes_accessed))

    vmem_limit = min(vmem_cap, max(int(vmem_needed(tile_b)), 32 * MiB))

    kernel = _make_discriminator_kernel(n_hidden, negative_slope)
    logits_p, rep_p = pl.pallas_call(
        kernel,
        grid=grid,
        in_specs=in_specs,
        out_specs=out_specs,
        out_shape=out_shape,
        compiler_params=pltpu.CompilerParams(
            dimension_semantics=("parallel",),
            vmem_limit_bytes=int(vmem_limit)),
        cost_estimate=cost,
    )(*flat_inputs)

    return logits_p[:B, :n_out], rep_p[:B, :]


def init_discriminator_params(key, input_size, hidden_sizes, num_labels):
    """Deterministic PyTorch-style uniform(-1/sqrt(fan_in), 1/sqrt(fan_in)) init.
    Weights stored as (in, out)."""
    sizes = [input_size] + list(hidden_sizes)
    hidden_params = []
    for i in range(len(sizes) - 1):
        fan_in = sizes[i]
        bound = 1.0 / (fan_in ** 0.5)
        key, kw, kb = jax.random.split(key, 3)
        w = jax.random.uniform(kw, (sizes[i], sizes[i + 1]),
                               minval=-bound, maxval=bound, dtype=jnp.float32)
        b = jax.random.uniform(kb, (1, sizes[i + 1]),
                               minval=-bound, maxval=bound, dtype=jnp.float32)
        hidden_params.append((w, b))
    fan_in = sizes[-1]
    bound = 1.0 / (fan_in ** 0.5)
    key, kw, kb = jax.random.split(key, 3)
    w_log = jax.random.uniform(kw, (sizes[-1], num_labels + 1),
                               minval=-bound, maxval=bound, dtype=jnp.float32)
    b_log = jax.random.uniform(kb, (1, num_labels + 1),
                               minval=-bound, maxval=bound, dtype=jnp.float32)
    return hidden_params, (w_log, b_log)


def _reference_forward(x, hidden_params, logit_params, negative_slope=0.2):
    """Pure-JAX reference with the same bf16-operand / f32-accumulate numerics."""
    h = x.astype(jnp.float32)
    for w, b in hidden_params:
        h = jnp.dot(h.astype(jnp.bfloat16), w.astype(jnp.bfloat16),
                    preferred_element_type=jnp.float32) + b
        h = jnp.where(h > 0, h, negative_slope * h)
    logits = jnp.dot(h.astype(jnp.bfloat16), logit_params[0].astype(jnp.bfloat16),
                     preferred_element_type=jnp.float32) + logit_params[1]
    return logits, h


if __name__ == "__main__":
    # Small, TPU-friendly shapes consistent with the module defaults
    # (input_size=768, hidden_sizes=[768], num_labels=3) scaled down.
    B = 40
    INPUT_SIZE = 128
    HIDDEN_SIZES = [128]
    NUM_LABELS = 3

    key = jax.random.PRNGKey(0)
    key, kx = jax.random.split(key)
    x = jax.random.normal(kx, (B, INPUT_SIZE), dtype=jnp.float32)

    hidden_params, logit_params = init_discriminator_params(
        key, INPUT_SIZE, HIDDEN_SIZES, NUM_LABELS)

    # Default path: auto tile_b (grid-aware -> 2 grid steps, exercises batch padding).
    logits, last_rep = discriminator_forward(x, hidden_params, logit_params)
    jax.block_until_ready((logits, last_rep))

    # Explicit small tile to also exercise a longer grid (grid=3) at tiny shapes.
    logits2, rep2 = discriminator_forward(x, hidden_params, logit_params, tile_b=16)
    jax.block_until_ready((logits2, rep2))

    # Correctness check against the pure-JAX reference (same bf16/f32 numerics;
    # kernel outputs are bf16 -> compare with bf16-level tolerance).
    ref_logits, ref_rep = _reference_forward(x, hidden_params, logit_params)
    assert logits.shape == (B, NUM_LABELS + 1)
    assert last_rep.shape == (B, HIDDEN_SIZES[-1])
    for lg, rp in ((logits, last_rep), (logits2, rep2)):
        lg32 = lg.astype(jnp.float32)
        rp32 = rp.astype(jnp.float32)
        assert jnp.allclose(lg32, ref_logits, atol=2e-2, rtol=2e-2), (
            float(jnp.max(jnp.abs(lg32 - ref_logits))))
        assert jnp.allclose(rp32, ref_rep, atol=2e-2, rtol=2e-2), (
            float(jnp.max(jnp.abs(rp32 - ref_rep))))

    print("KERNEL_OK")
</pallas_src>

<mosaic_0001>
module attributes {stable_mosaic.version = 11 : i64} {
  func.func @kernel(%arg0: i32, %arg1: memref<32x128xbf16, #tpu.memory_space<vmem>>, %arg2: memref<128x128xbf16, #tpu.memory_space<vmem>>, %arg3: memref<1x128xf32, #tpu.memory_space<vmem>>, %arg4: memref<128x128xbf16, #tpu.memory_space<vmem>>, %arg5: memref<1x128xf32, #tpu.memory_space<vmem>>, %arg6: memref<32x128xbf16, #tpu.memory_space<vmem>>, %arg7: memref<32x128xbf16, #tpu.memory_space<vmem>>) attributes {dimension_semantics = [#tpu.dimension_semantics<parallel>], iteration_bounds = array<i64: 2>, scalar_prefetch = 0 : i64, scratch_operands = 0 : i64, tpu.core_type = #tpu.core_type<tc>, window_params = [{transform_indices = @transform_0, window_bounds = array<i64: 32, 128>}, {pipeline_mode = #tpu.pipeline_mode<synchronous>, transform_indices = @transform_1, window_bounds = array<i64: 128, 128>}, {pipeline_mode = #tpu.pipeline_mode<synchronous>, transform_indices = @transform_2, window_bounds = array<i64: 1, 128>}, {pipeline_mode = #tpu.pipeline_mode<synchronous>, transform_indices = @transform_3, window_bounds = array<i64: 128, 128>}, {pipeline_mode = #tpu.pipeline_mode<synchronous>, transform_indices = @transform_4, window_bounds = array<i64: 1, 128>}, {transform_indices = @transform_5, window_bounds = array<i64: 32, 128>}, {transform_indices = @transform_6, window_bounds = array<i64: 32, 128>}]} {
    %c0 = arith.constant 0 : index
    %c0_0 = arith.constant 0 : index
    %0 = vector.load %arg1[%c0, %c0_0] : memref<32x128xbf16, #tpu.memory_space<vmem>>, vector<32x128xbf16>
    %c0_1 = arith.constant 0 : index
    %c0_2 = arith.constant 0 : index
    %1 = vector.load %arg2[%c0_1, %c0_2] : memref<128x128xbf16, #tpu.memory_space<vmem>>, vector<128x128xbf16>
    %c0_3 = arith.constant 0 : index
    %c0_4 = arith.constant 0 : index
    %2 = vector.load %arg3[%c0_3, %c0_4] : memref<1x128xf32, #tpu.memory_space<vmem>>, vector<1x128xf32>
    %cst = arith.constant dense<0.000000e+00> : vector<32x128xf32>
    %3 = tpu.matmul %0, %1, %cst {dimension_numbers = #tpu.dot_dimension_numbers<[1], [0], [0], [1], [0, 0, 1, 1], [], []>} : vector<32x128xbf16>, vector<128x128xbf16>, vector<32x128xf32> -> vector<32x128xf32>
    %4 = vector.broadcast %2 : vector<1x128xf32> to vector<32x128xf32>
    %5 = arith.addf %3, %4 : vector<32x128xf32>
    %cst_5 = arith.constant 2.000000e-01 : f32
    %6 = vector.broadcast %cst_5 : f32 to vector<32x128xf32>
    %7 = arith.mulf %6, %5 : vector<32x128xf32>
    %8 = arith.maximumf %5, %7 : vector<32x128xf32>
    %9 = arith.truncf %8 : vector<32x128xf32> to vector<32x128xbf16>
    %c0_6 = arith.constant 0 : index
    %c0_7 = arith.constant 0 : index
    %10 = vector.load %arg7[%c0_6, %c0_7] : memref<32x128xbf16, #tpu.memory_space<vmem>>, vector<32x128xbf16>
    tpu.vector_store %arg7[%c0_6, %c0_7], %9 {strides = array<i32>} : memref<32x128xbf16, #tpu.memory_space<vmem>>, vector<32x128xbf16>,
    %11 = arith.truncf %8 : vector<32x128xf32> to vector<32x128xbf16>
    %c0_8 = arith.constant 0 : index
    %c0_9 = arith.constant 0 : index
    %12 = vector.load %arg4[%c0_8, %c0_9] : memref<128x128xbf16, #tpu.memory_space<vmem>>, vector<128x128xbf16>
    %cst_10 = arith.constant dense<0.000000e+00> : vector<32x128xf32>
    %13 = tpu.matmul %11, %12, %cst_10 {dimension_numbers = #tpu.dot_dimension_numbers<[1], [0], [0], [1], [0, 0, 1, 1], [], []>} : vector<32x128xbf16>, vector<128x128xbf16>, vector<32x128xf32> -> vector<32x128xf32>
    %c0_11 = arith.constant 0 : index
    %c0_12 = arith.constant 0 : index
    %14 = vector.load %arg5[%c0_11, %c0_12] : memref<1x128xf32, #tpu.memory_space<vmem>>, vector<1x128xf32>
    %15 = vector.broadcast %14 : vector<1x128xf32> to vector<32x128xf32>
    %16 = arith.addf %13, %15 : vector<32x128xf32>
    %17 = arith.truncf %16 : vector<32x128xf32> to vector<32x128xbf16>
    %c0_13 = arith.constant 0 : index
    %c0_14 = arith.constant 0 : index
    %18 = vector.load %arg6[%c0_13, %c0_14] : memref<32x128xbf16, #tpu.memory_space<vmem>>, vector<32x128xbf16>
    tpu.vector_store %arg6[%c0_13, %c0_14], %17 {strides = array<i32>} : memref<32x128xbf16, #tpu.memory_space<vmem>>, vector<32x128xbf16>,
    return
  }
  func.func @transform_0(%arg0: i32) -> (i32, i32) {
    %c0_i32 = arith.constant 0 : i32
    %c0_i32_0 = arith.constant 0 : i32
    return %arg0, %c0_i32 : i32, i32
  }
  func.func @transform_1(%arg0: i32) -> (i32, i32) {
    %c0_i32 = arith.constant 0 : i32
    %c0_i32_0 = arith.constant 0 : i32
    %c0_i32_1 = arith.constant 0 : i32
    return %c0_i32, %c0_i32_0 : i32, i32
  }
  func.func @transform_2(%arg0: i32) -> (i32, i32) {
    %c0_i32 = arith.constant 0 : i32
    %c0_i32_0 = arith.constant 0 : i32
    %c0_i32_1 = arith.constant 0 : i32
    return %c0_i32, %c0_i32_0 : i32, i32
  }
  func.func @transform_3(%arg0: i32) -> (i32, i32) {
    %c0_i32 = arith.constant 0 : i32
    %c0_i32_0 = arith.constant 0 : i32
    %c0_i32_1 = arith.constant 0 : i32
    return %c0_i32, %c0_i32_0 : i32, i32
  }
  func.func @transform_4(%arg0: i32) -> (i32, i32) {
    %c0_i32 = arith.constant 0 : i32
    %c0_i32_0 = arith.constant 0 : i32
    %c0_i32_1 = arith.constant 0 : i32
    return %c0_i32, %c0_i32_0 : i32, i32
  }
  func.func @transform_5(%arg0: i32) -> (i32, i32) {
    %c0_i32 = arith.constant 0 : i32
    %c0_i32_0 = arith.constant 0 : i32
    return %arg0, %c0_i32 : i32, i32
  }
  func.func @transform_6(%arg0: i32) -> (i32, i32) {
    %c0_i32 = arith.constant 0 : i32
    %c0_i32_0 = arith.constant 0 : i32
    return %arg0, %c0_i32 : i32, i32
  }
}

</mosaic_0001>

<llo_original>
// kernel: tpu_custom_call.1
$region0: #{tpu_custom_call.1}
  #allocation0 [shape = 'u32[]', space=smem, size = 0x4, offset = 0x4, fixed_abs, tag = 'smem constant byte address 0x4 - core index']
  #allocation1 [shape = 'u32[144,128]{1,0:T(1,128)}', space=vmem, size = 0x12000, scoped, tag = 'internal scratch']
  %s0 = inlined_call_operand.hbm [shape: bf16[64,128], index: 0, kind: input, shape index: {}]
  %s1 = inlined_call_operand.hbm [shape: bf16[128,128], index: 1, kind: input, shape index: {}]
  %s2 = inlined_call_operand.vmem [shape: f32[1,128], index: 2, kind: input, shape index: {}]
  %s3 = inlined_call_operand.hbm [shape: bf16[128,128], index: 3, kind: input, shape index: {}]
  %s4 = inlined_call_operand.vmem [shape: f32[1,128], index: 4, kind: input, shape index: {}]
  %s5 = inlined_call_operand.hbm [shape: bf16[64,128], index: 5, kind: output, shape index: {0}]
  %s6 = inlined_call_operand.hbm [shape: bf16[64,128], index: 6, kind: output, shape index: {1}]
  %7 = xla_tuple %s5, %s6
  %s8 = sld [smem:[#allocation0]]
  $region73: #{tpu_custom_call.1} parent=0
    _
  %s10 = ssub.s32 1, %s8
  %s11 = scalar_select 0, %s10, %s8
  $region1: #{tpu_custom_call.1} parent=0
    #allocation2 [shape = 'u8[16384]{0}', space=vmem, size = 0x4000, scoped, tag = 'input window, operand 0']
    #allocation3 [shape = 's32[2]{0}', space=sflag, size = 0x8, scoped, tag = 'scoped memory for tpu_custom_call.1']
    #allocation4 [shape = 's32[2]{0}', space=sflag, size = 0x8, scoped, tag = 'scoped memory for tpu_custom_call.1']
    #allocation5 [shape = 'u8[32768]{0}', space=vmem, size = 0x8000, scoped, tag = 'input window, operand 1, single buffered']
    #allocation6 [shape = 's32[1]{0}', space=sflag, size = 0x4, scoped, tag = 'scoped memory for tpu_custom_call.1']
    #allocation7 [shape = 'u8[32768]{0}', space=vmem, size = 0x8000, scoped, tag = 'input window, operand 3, single buffered']
    #allocation8 [shape = 'u8[16384]{0}', space=vmem, size = 0x4000, scoped, tag = 'output window, operand 0']
    #allocation9 [shape = 'u8[16384]{0}', space=vmem, size = 0x4000, scoped, tag = 'output window, operand 1']
    #allocation10 [shape = 's32[2]{0}', space=sflag, size = 0x8, scoped, tag = 'scoped memory for tpu_custom_call.1']
    %12 = vsyncpa [#allocation3], 0
    %s13 = scalar_lea.sflag [#allocation3], 1
    %14 = vsyncpa %s13, 0
    %15 = vsyncpa [#allocation6], 0
    %16 = vsyncpa [#allocation4], 0
    %s17 = scalar_lea.sflag [#allocation4], 1
    %18 = vsyncpa %s17, 0
    %19 = vsyncpa [#allocation10], 0
    %s20 = scalar_lea.sflag [#allocation10], 1
    %21 = vsyncpa %s20, 0
    loop: start=0, step=1, limit=4
    $region2: #{tpu_custom_call.1} parent=1 // loop_pre_header
      _
    $region3: #{tpu_custom_call.1} parent=1 // loop_header
      %s23 = sphi 0, %s27
      %p24 = scmp.ge.s32.totalorder %s23, 4
      %s33 = sphi 0, %s35
      %s36 = sphi 0, %s33
      %s37 = sphi 0, %s36
      %s53 = sphi 0, %s37
      %s57 = sphi 0, %s57
      %s59 = sphi 0, %s57
      %s60 = sphi 0, %s59
      %s74 = sphi 0, %s60
      %s78 = sphi 0, %s78
      %s80 = sphi 0, %s78
      %s81 = sphi 0, %s80
      %s95 = sphi 0, %s81
      %s99 = sphi 0, %s99
      %s101 = sphi 0, %s99
      %s102 = sphi 0, %s101
      %s116 = sphi 0, %s102
      %s120 = sphi 0, %s120
      %s122 = sphi 0, %s120
      %s123 = sphi 0, %s122
      %s137 = sphi 0, %s123
      %s143 = sphi 0, %s145
      %s146 = sphi 0, %s143
      %s147 = sphi 0, %s146
      %s163 = sphi 0, %s147
      %s169 = sphi 0, %s171
      %s172 = sphi 0, %s169
      %s173 = sphi 0, %s172
      %s189 = sphi 0, %s173
    $region4: #{tpu_custom_call.1} parent=1 // loop_header_branch
      %26 = sbr.rel (%p24) target = $region8
    $region5: #{tpu_custom_call.1} parent=1 // loop_body
      %s28 = ssub.s32 %s23, 1
      %s29 = ssub.s32 %s23, 2
      %s30 = sadd.s32 %s23, 1
      %s31 = ssub.s32 %s23, %s30
      %p32 = scmp.eq.s32.totalorder %s31, 0
      %s34 = sadd.s32 %s33, 1
      %s35 = scalar_select %p32, %s33, %s34
      %p38 = pneg %p32
      %p39 = scmp.eq.s32.totalorder %s23, 1
      %p40 = por %p38, %p39
      %p41 = scmp.ne.s32.totalorder %s33, %s36
      %p42 = scmp.eq.s32.totalorder %s23, 0
      %p43 = por %p41, %p42
      %p44 = scmp.ne.s32.totalorder %s33, %s36
      %p45 = scmp.eq.s32.totalorder %s28, 1
      %p46 = por %p44, %p45
      %p47 = scmp.ne.s32.totalorder %s36, %s37
      %p48 = scmp.eq.s32.totalorder %s28, 0
      %p49 = por %p47, %p48
      %p50 = scmp.ne.s32.totalorder %s36, %s37
      %p51 = scmp.eq.s32.totalorder %s29, 1
      %p52 = por %p50, %p51
      %p54 = scmp.ne.s32.totalorder %s37, %s53
      %p55 = scmp.eq.s32.totalorder %s29, 0
      %p56 = por %p54, %p55
      %s58 = sadd.s32 %s57, 1
      %p61 = scmp.eq.s32.totalorder %s23, 1
      %p62 = scmp.ne.s32.totalorder %s57, %s59
      %p63 = scmp.eq.s32.totalorder %s23, 0
      %p64 = por %p62, %p63
      %p65 = scmp.ne.s32.totalorder %s57, %s59
      %p66 = scmp.eq.s32.totalorder %s28, 1
      %p67 = por %p65, %p66
      %p68 = scmp.ne.s32.totalorder %s59, %s60
      %p69 = scmp.eq.s32.totalorder %s28, 0
      %p70 = por %p68, %p69
      %p71 = scmp.ne.s32.totalorder %s59, %s60
      %p72 = scmp.eq.s32.totalorder %s29, 1
      %p73 = por %p71, %p72
      %p75 = scmp.ne.s32.totalorder %s60, %s74
      %p76 = scmp.eq.s32.totalorder %s29, 0
      %p77 = por %p75, %p76
      %s79 = sadd.s32 %s78, 1
      %p82 = scmp.eq.s32.totalorder %s23, 1
      %p83 = scmp.ne.s32.totalorder %s78, %s80
      %p84 = scmp.eq.s32.totalorder %s23, 0
      %p85 = por %p83, %p84
      %p86 = scmp.ne.s32.totalorder %s78, %s80
      %p87 = scmp.eq.s32.totalorder %s28, 1
      %p88 = por %p86, %p87
      %p89 = scmp.ne.s32.totalorder %s80, %s81
      %p90 = scmp.eq.s32.totalorder %s28, 0
      %p91 = por %p89, %p90
      %p92 = scmp.ne.s32.totalorder %s80, %s81
      %p93 = scmp.eq.s32.totalorder %s29, 1
      %p94 = por %p92, %p93
      %p96 = scmp.ne.s32.totalorder %s81, %s95
      %p97 = scmp.eq.s32.totalorder %s29, 0
      %p98 = por %p96, %p97
      %s100 = sadd.s32 %s99, 1
      %p103 = scmp.eq.s32.totalorder %s23, 1
      %p104 = scmp.ne.s32.totalorder %s99, %s101
      %p105 = scmp.eq.s32.totalorder %s23, 0
      %p106 = por %p104, %p105
      %p107 = scmp.ne.s32.totalorder %s99, %s101
      %p108 = scmp.eq.s32.totalorder %s28, 1
      %p109 = por %p107, %p108
      %p110 = scmp.ne.s32.totalorder %s101, %s102
      %p111 = scmp.eq.s32.totalorder %s28, 0
      %p112 = por %p110, %p111
      %p113 = scmp.ne.s32.totalorder %s101, %s102
      %p114 = scmp.eq.s32.totalorder %s29, 1
      %p115 = por %p113, %p114
      %p117 = scmp.ne.s32.totalorder %s102, %s116
      %p118 = scmp.eq.s32.totalorder %s29, 0
      %p119 = por %p117, %p118
      %s121 = sadd.s32 %s120, 1
      %p124 = scmp.eq.s32.totalorder %s23, 1
      %p125 = scmp.ne.s32.totalorder %s120, %s122
      %p126 = scmp.eq.s32.totalorder %s23, 0
      %p127 = por %p125, %p126
      %p128 = scmp.ne.s32.totalorder %s120, %s122
      %p129 = scmp.eq.s32.totalorder %s28, 1
      %p130 = por %p128, %p129
      %p131 = scmp.ne.s32.totalorder %s122, %s123
      %p132 = scmp.eq.s32.totalorder %s28, 0
      %p133 = por %p131, %p132
      %p134 = scmp.ne.s32.totalorder %s122, %s123
      %p135 = scmp.eq.s32.totalorder %s29, 1
      %p136 = por %p134, %p135
      %p138 = scmp.ne.s32.totalorder %s123, %s137
      %p139 = scmp.eq.s32.totalorder %s29, 0
      %p140 = por %p138, %p139
      %s141 = ssub.s32 %s23, %s30
      %p142 = scmp.eq.s32.totalorder %s141, 0
      %s144 = sadd.s32 %s143, 1
      %s145 = scalar_select %p142, %s143, %s144
      %p148 = pneg %p142
      %p149 = scmp.eq.s32.totalorder %s23, 1
      %p150 = por %p148, %p149
      %p151 = scmp.ne.s32.totalorder %s143, %s146
      %p152 = scmp.eq.s32.totalorder %s23, 0
      %p153 = por %p151, %p152
      %p154 = scmp.ne.s32.totalorder %s143, %s146
      %p155 = scmp.eq.s32.totalorder %s28, 1
      %p156 = por %p154, %p155
      %p157 = scmp.ne.s32.totalorder %s146, %s147
      %p158 = scmp.eq.s32.totalorder %s28, 0
      %p159 = por %p157, %p158
      %p160 = scmp.ne.s32.totalorder %s146, %s147
      %p161 = scmp.eq.s32.totalorder %s29, 1
      %p162 = por %p160, %p161
      %p164 = scmp.ne.s32.totalorder %s147, %s163
      %p165 = scmp.eq.s32.totalorder %s29, 0
      %p166 = por %p164, %p165
      %s167 = ssub.s32 %s23, %s30
      %p168 = scmp.eq.s32.totalorder %s167, 0
      %s170 = sadd.s32 %s169, 1
      %s171 = scalar_select %p168, %s169, %s170
      %p174 = pneg %p168
      %p175 = scmp.eq.s32.totalorder %s23, 1
      %p176 = por %p174, %p175
      %p177 = scmp.ne.s32.totalorder %s169, %s172
      %p178 = scmp.eq.s32.totalorder %s23, 0
      %p179 = por %p177, %p178
      %p180 = scmp.ne.s32.totalorder %s169, %s172
      %p181 = scmp.eq.s32.totalorder %s28, 1
      %p182 = por %p180, %p181
      %p183 = scmp.ne.s32.totalorder %s172, %s173
      %p184 = scmp.eq.s32.totalorder %s28, 0
      %p185 = por %p183, %p184
      %p186 = scmp.ne.s32.totalorder %s172, %s173
      %p187 = scmp.eq.s32.totalorder %s29, 1
      %p188 = por %p186, %p187
      %p190 = scmp.ne.s32.totalorder %s173, %s189
      %p191 = scmp.eq.s32.totalorder %s29, 0
      %p192 = por %p190, %p191
      %p193 = scmp.le.s32.totalorder 1, %s23
      %p194 = scmp.lt.s32.totalorder %s23, 3
      %p195 = pnand %p193, %p194
      %p196 = pneg %p195
      // Predicated region
      $region9: #{tpu_custom_call.1} parent=5 // pred_check
        _
      $region10: #{tpu_custom_call.1} parent=5 // pred_check_branch
        %198 = sbr.rel (%p195) target = $region12
      $region11: #{tpu_custom_call.1} parent=5 // pred_region
        %s199 = ssub.s32 %s23, 1
        // Predicated region
        $region13: #{tpu_custom_call.1} parent=11 // pred_check
          %p200 = pneg %p70
        $region14: #{tpu_custom_call.1} parent=11 // pred_check_branch
          %202 = sbr.rel (%p200) target = $region16
        $region15: #{tpu_custom_call.1} parent=11 // pred_region
          %s204 = ssub.s32 1024, 1024
          %205 = vsyncadd [#allocation6], %s204
          %s206 = sshll.u32 [#allocation5], 4
          %s207 = int_to_ptr.vmem [resolvable:$true] %s206
          %212 = dma.hbm_to_vmem [thread:$0]  %s1, 1024, %s207, [#allocation6], 64, 64, 4
        $region16: #{tpu_custom_call.1} parent=11 // pred_fallthru
          _
        // Predicated region
        $region17: #{tpu_custom_call.1} parent=11 // pred_check
          %p213 = pneg %p91
        $region18: #{tpu_custom_call.1} parent=11 // pred_check_branch
          %215 = sbr.rel (%p213) target = $region20
        $region19: #{tpu_custom_call.1} parent=11 // pred_region
          _
        $region20: #{tpu_custom_call.1} parent=11 // pred_fallthru
          _
        // Predicated region
        $region21: #{tpu_custom_call.1} parent=11 // pred_check
          %p216 = pneg %p112
        $region22: #{tpu_custom_call.1} parent=11 // pred_check_branch
          %218 = sbr.rel (%p216) target = $region24
        $region23: #{tpu_custom_call.1} parent=11 // pred_region
          %s220 = ssub.s32 1024, 1024
          %221 = vsyncadd [#allocation6], %s220
          %s222 = sshll.u32 [#allocation7], 4
          %s223 = int_to_ptr.vmem [resolvable:$true] %s222
          %228 = dma.hbm_to_vmem [thread:$0]  %s3, 1024, %s223, [#allocation6], 64, 64, 4
        $region24: #{tpu_custom_call.1} parent=11 // pred_fallthru
          _
        // Predicated region
        $region25: #{tpu_custom_call.1} parent=11 // pred_check
          %p229 = pneg %p133
        $region26: #{tpu_custom_call.1} parent=11 // pred_check_branch
          %231 = sbr.rel (%p229) target = $region28
        $region27: #{tpu_custom_call.1} parent=11 // pred_region
          _
        $region28: #{tpu_custom_call.1} parent=11 // pred_fallthru
          _
      $region12: #{tpu_custom_call.1} parent=5 // pred_fallthru
        _
      %p232 = scmp.lt.s32.totalorder %s23, 2
      // Predicated region
      $region29: #{tpu_custom_call.1} parent=5 // pred_check
        %p233 = pneg %p232
      $region30: #{tpu_custom_call.1} parent=5 // pred_check_branch
        %235 = sbr.rel (%p233) target = $region32
      $region31: #{tpu_custom_call.1} parent=5 // pred_region
        // Predicated region
        $region33: #{tpu_custom_call.1} parent=31 // pred_check
          %p236 = pneg %p43
        $region34: #{tpu_custom_call.1} parent=31 // pred_check_branch
          %238 = sbr.rel (%p236) target = $region36
        $region35: #{tpu_custom_call.1} parent=31 // pred_region
          %s239 = sand.u32 %s33, 1
          %s240 = scalar_lea.sflag [#allocation3], %s239
          %s241 = sand.u32 %s33, 1
          %s242 = smul.addr %s241, 16
          %s243 = scalar_lea.vmem [#allocation2], %s242
          %s244 = smul.u32 4, %s23
          %s246 = ssub.s32 256, 256
          %247 = vsyncadd %s240, %s246
          %s248 = smul.addr %s244, 64
          %s249 = scalar_lea.hbm %s0, %s248
          %s250 = sshll.u32 %s243, 4
          %s251 = int_to_ptr.vmem [resolvable:$true] %s250
          %256 = dma.hbm_to_vmem [thread:$0]  %s249, 256, %s251, %s240, 64, 64, 4
        $region36: #{tpu_custom_call.1} parent=31 // pred_fallthru
          _
      $region32: #{tpu_custom_call.1} parent=5 // pred_fallthru
        _
      %p257 = scmp.le.s32.totalorder 1, %s23
      %p258 = scmp.lt.s32.totalorder %s23, 3
      %p259 = pnand %p257, %p258
      %p260 = pneg %p259
      // Predicated region
      $region37: #{tpu_custom_call.1} parent=5 // pred_check
        _
      $region38: #{tpu_custom_call.1} parent=5 // pred_check_branch
        %262 = sbr.rel (%p259) target = $region40
      $region39: #{tpu_custom_call.1} parent=5 // pred_region
        %s263 = ssub.s32 %s23, 1
        %s264 = sand.u32 %s36, 1
        %s265 = scalar_lea.sflag [#allocation3], %s264
        %s266 = sand.u32 %s36, 1
        %s267 = smul.addr %s266, 16
        %s268 = scalar_lea.vmem [#allocation2], %s267
        // Predicated region
        $region41: #{tpu_custom_call.1} parent=39 // pred_check
          %p269 = pneg %p49
        $region42: #{tpu_custom_call.1} parent=39 // pred_check_branch
          %271 = sbr.rel (%p269) target = $region44
        $region43: #{tpu_custom_call.1} parent=39 // pred_region
          %272 = dma.done %s265, 256
        $region44: #{tpu_custom_call.1} parent=39 // pred_fallthru
          _
        // Predicated region
        $region45: #{tpu_custom_call.1} parent=39 // pred_check
          %p273 = pneg %p70
        $region46: #{tpu_custom_call.1} parent=39 // pred_check_branch
          %275 = sbr.rel (%p273) target = $region48
        $region47: #{tpu_custom_call.1} parent=39 // pred_region
          %276 = dma.done [#allocation6], 1024
        $region48: #{tpu_custom_call.1} parent=39 // pred_fallthru
          _
        // Predicated region
        $region49: #{tpu_custom_call.1} parent=39 // pred_check
          %p277 = pneg %p112
        $region50: #{tpu_custom_call.1} parent=39 // pred_check_branch
          %279 = sbr.rel (%p277) target = $region52
        $region51: #{tpu_custom_call.1} parent=39 // pred_region
          %280 = dma.done [#allocation6], 1024
        $region52: #{tpu_custom_call.1} parent=39 // pred_fallthru
          _
        %s281 = sand.u32 %s36, 1
        %s282 = scalar_lea.sflag [#allocation3], %s281
        %s283 = sand.u32 %s36, 1
        %s284 = smul.addr %s283, 16
        %s285 = scalar_lea.vmem [#allocation2], %s284
        %p286 = pneg %p49
        %p287 = pneg %p46
        %p288 = pneg %p70
        %p289 = pneg %p67
        %p290 = pneg %p91
        %p291 = pneg %p88
        %p292 = pneg %p112
        %p293 = pneg %p109
        %p294 = pneg %p133
        %p295 = pneg %p130
        %p296 = pneg %p159
        %p297 = pneg %p156
        %s298 = sand.u32 %s146, 1
        %s299 = scalar_lea.sflag [#allocation4], %s298
        %s300 = sand.u32 %s146, 1
        %s301 = smul.addr %s300, 16
        %s302 = scalar_lea.vmem [#allocation8], %s301
        %p303 = pneg %p185
        %p304 = pneg %p182
        %s305 = sand.u32 %s172, 1
        %s306 = scalar_lea.sflag [#allocation10], %s305
        %s307 = sand.u32 %s172, 1
        %s308 = smul.addr %s307, 16
        %s309 = scalar_lea.vmem [#allocation9], %s308
        %s310 = smul.u32 4, %s28
        %s311 = smul.u32 4, %s28
        %s312 = smul.u32 4, %s28
        %v314 = vld [vmem:[%s268] sm:$0xf]
        %v315 = vld [vmem:[%s268 + $0x4] sm:$0xf]
        %v316 = vld [vmem:[%s268 + $0x8] sm:$0xf]
        %v317 = vld [vmem:[%s268 + $0xc] sm:$0xf]
        %v318 = vld [vmem:[#allocation5] sm:$0xf]
        %v319 = vld [vmem:[#allocation5 + $0x4] sm:$0xf]
        %v320 = vld [vmem:[#allocation5 + $0x8] sm:$0xf]
        %v321 = vld [vmem:[#allocation5 + $0xc] sm:$0xf]
        %v322 = vld [vmem:[#allocation5 + $0x10] sm:$0xf]
        %v323 = vld [vmem:[#allocation5 + $0x14] sm:$0xf]
        %v324 = vld [vmem:[#allocation5 + $0x18] sm:$0xf]
        %v325 = vld [vmem:[#allocation5 + $0x1c] sm:$0xf]
        %v326 = vld [vmem:[#allocation5 + $0x20] sm:$0xf]
        %v327 = vld [vmem:[#allocation5 + $0x24] sm:$0xf]
        %v328 = vld [vmem:[#allocation5 + $0x28] sm:$0xf]
        %v329 = vld [vmem:[#allocation5 + $0x2c] sm:$0xf]
        %v330 = vld [vmem:[#allocation5 + $0x30] sm:$0xf]
        %v331 = vld [vmem:[#allocation5 + $0x34] sm:$0xf]
        %v332 = vld [vmem:[#allocation5 + $0x38] sm:$0xf]
        %v333 = vld [vmem:[#allocation5 + $0x3c] sm:$0xf]
        %v334 = vld [vmem:[%s2] sm:$0x1]
        %v336 = vlaneseq
        %v337 = vshrl.u32 %v336, 7
        %v338 = vsub.s32 0, %v337
        %v339 = vrot.slane %v334, %v338
        %v345 = vunpack.c.l.b16 %v314
        %v346 = vunpack.c.l.b16 %v315
        %v347 = vunpack.c.l.b16 %v316
        %v348 = vunpack.c.l.b16 %v317
        %v349 = vpack.c.b16 %v346, %v345
        %v350 = vpack.c.b16 %v348, %v347
        %v369 = vunpack.c.l.b16 %v318
        %v370 = vunpack.c.l.b16 %v319
        %v371 = vunpack.c.l.b16 %v320
        %v372 = vunpack.c.l.b16 %v321
        %v373 = vunpack.c.l.b16 %v322
        %v374 = vunpack.c.l.b16 %v323
        %v375 = vunpack.c.l.b16 %v324
        %v376 = vunpack.c.l.b16 %v325
        %v377 = vunpack.c.l.b16 %v326
        %v378 = vunpack.c.l.b16 %v327
        %v379 = vunpack.c.l.b16 %v328
        %v380 = vunpack.c.l.b16 %v329
        %v381 = vunpack.c.l.b16 %v330
        %v382 = vunpack.c.l.b16 %v331
        %v383 = vunpack.c.l.b16 %v332
        %v384 = vunpack.c.l.b16 %v333
        %v385 = vpack.c.b16 %v370, %v369
        %v386 = vpack.c.b16 %v372, %v371
        %v387 = vpack.c.b16 %v374, %v373
        %v388 = vpack.c.b16 %v376, %v375
        %v389 = vpack.c.b16 %v378, %v377
        %v390 = vpack.c.b16 %v380, %v379
        %v391 = vpack.c.b16 %v382, %v381
        %v392 = vpack.c.b16 %v384, %v383
        %401 = vmatprep.subr.bf16.mxu0 0
        %402 = vmatpush1.bf16.msra.mxu0 %v385
        %403 = vmatprep.subr.bf16.mxu0 0
        %404 = vmatpush1.bf16.msra.mxu0 %v386
        %405 = vmatprep.subr.bf16.mxu0 0
        %406 = vmatpush1.bf16.msra.mxu0 %v387
        %407 = vmatprep.subr.bf16.mxu0 0
        %408 = vmatpush1.bf16.msra.mxu0 %v388
        %409 = vmatprep.subr.bf16.mxu0 0
        %410 = vmatpush1.bf16.msra.mxu0 %v389
        %411 = vmatprep.subr.bf16.mxu0 0
        %412 = vmatpush1.bf16.msra.mxu0 %v390
        %413 = vmatprep.subr.bf16.mxu0 0
        %414 = vmatpush1.bf16.msra.mxu0 %v391
        %415 = vmatprep.subr.bf16.mxu0 0
        %416 = vmatpush1.bf16.msra.mxu0 %v392
        %417 = vmatprep.subr.bf16.mxu0 0
        %418 = vmatpush1.bf16.msra.mxu0 0
        %419 = vmatprep.subr.bf16.mxu0 0
        %420 = vmatpush1.bf16.msra.mxu0 0
        %421 = vmatprep.subr.bf16.mxu0 0
        %422 = vmatpush1.bf16.msra.mxu0 0
        %423 = vmatprep.subr.bf16.mxu0 0
        %424 = vmatpush1.bf16.msra.mxu0 0
        %425 = vmatprep.subr.bf16.mxu0 0
        %426 = vmatpush1.bf16.msra.mxu0 0
        %427 = vmatprep.subr.bf16.mxu0 0
        %428 = vmatpush1.bf16.msra.mxu0 0
        %429 = vmatprep.subr.bf16.mxu0 0
        %430 = vmatpush1.bf16.msra.mxu0 0
        %431 = vmatprep.subr.bf16.mxu0 0
        %432 = vmatpush1.bf16.msra.mxu0 0
        %433 = vmatprep.mubr.bf16.mxu0 0
        %434 = vmatmul.mubr.bf16.gmra.mrb[0].mxu0 %v349
        %v435 = vpop.f32.mrb[0].mxu0
        %v436 = vadd.f32 %v339, %v435
        %v437 = vpop.f32.mrb[0].mxu0
        %v438 = vpop.f32.mrb[0].mxu0
        %v439 = vadd.f32 %v339, %v438
        %v440 = vpop.f32.mrb[0].mxu0
        %441 = vmatprep.mubr.bf16.mxu0 0
        %442 = vmatmul.mubr.bf16.gmra.mrb[0].mxu0 %v350
        %v443 = vpop.f32.mrb[0].mxu0
        %v444 = vadd.f32 %v339, %v443
        %v445 = vpop.f32.mrb[0].mxu0
        %v446 = vpop.f32.mrb[0].mxu0
        %v447 = vadd.f32 %v339, %v446
        %v448 = vpop.f32.mrb[0].mxu0
        %449 = vdwg.mxu0
        %v450 = vmul.f32 %v436, 0.2
        %v451 = vmul.f32 %v439, 0.2
        %v452 = vmul.f32 %v444, 0.2
        %v453 = vmul.f32 %v447, 0.2
        %v454 = vmax.f32 %v436, %v450
        %v455 = vmax.f32 %v439, %v451
        %v456 = vmax.f32 %v444, %v452
        %v457 = vmax.f32 %v447, %v453
        %v458 = vpack.c.bf16 %v455, %v454
        %v459 = vpack.c.bf16 %v457, %v456
        %v462 = vunpack.c.l.b16 %v458
        %v463 = vunpack.c.h.b16 %v458
        %v464 = vunpack.c.l.b16 %v459
        %v465 = vunpack.c.h.b16 %v459
        %v466 = vpack.c.b16 %v462, %v462
        %v467 = vpack.c.b16 %v463, %v463
        %v468 = vpack.c.b16 %v464, %v464
        %v469 = vpack.c.b16 %v465, %v465
        %474 = vst [vmem:[%s309] sm:$0xf] %v466
        %475 = vst [vmem:[%s309 + $0x4] sm:$0xf] %v467
        %476 = vst [vmem:[%s309 + $0x8] sm:$0xf] %v468
        %477 = vst [vmem:[%s309 + $0xc] sm:$0xf] %v469
        %v478 = vld [vmem:[#allocation7] sm:$0xf]
        %v479 = vld [vmem:[#allocation7 + $0x4] sm:$0xf]
        %v480 = vld [vmem:[#allocation7 + $0x8] sm:$0xf]
        %v481 = vld [vmem:[#allocation7 + $0xc] sm:$0xf]
        %v482 = vld [vmem:[#allocation7 + $0x10] sm:$0xf]
        %v483 = vld [vmem:[#allocation7 + $0x14] sm:$0xf]
        %v484 = vld [vmem:[#allocation7 + $0x18] sm:$0xf]
        %v485 = vld [vmem:[#allocation7 + $0x1c] sm:$0xf]
        %v486 = vld [vmem:[#allocation7 + $0x20] sm:$0xf]
        %v487 = vld [vmem:[#allocation7 + $0x24] sm:$0xf]
        %v488 = vld [vmem:[#allocation7 + $0x28] sm:$0xf]
        %v489 = vld [vmem:[#allocation7 + $0x2c] sm:$0xf]
        %v490 = vld [vmem:[#allocation7 + $0x30] sm:$0xf]
        %v491 = vld [vmem:[#allocation7 + $0x34] sm:$0xf]
        %v492 = vld [vmem:[#allocation7 + $0x38] sm:$0xf]
        %v493 = vld [vmem:[#allocation7 + $0x3c] sm:$0xf]
        %v494 = vld [vmem:[%s4] sm:$0x1]
        %v496 = vlaneseq
        %v497 = vshrl.u32 %v496, 7
        %v498 = vsub.s32 0, %v497
        %v499 = vrot.slane %v494, %v498
        %v517 = vunpack.c.l.b16 %v478
        %v518 = vunpack.c.l.b16 %v479
        %v519 = vunpack.c.l.b16 %v480
        %v520 = vunpack.c.l.b16 %v481
        %v521 = vunpack.c.l.b16 %v482
        %v522 = vunpack.c.l.b16 %v483
        %v523 = vunpack.c.l.b16 %v484
        %v524 = vunpack.c.l.b16 %v485
        %v525 = vunpack.c.l.b16 %v486
        %v526 = vunpack.c.l.b16 %v487
        %v527 = vunpack.c.l.b16 %v488
        %v528 = vunpack.c.l.b16 %v489
        %v529 = vunpack.c.l.b16 %v490
        %v530 = vunpack.c.l.b16 %v491
        %v531 = vunpack.c.l.b16 %v492
        %v532 = vunpack.c.l.b16 %v493
        %v533 = vpack.c.b16 %v518, %v517
        %v534 = vpack.c.b16 %v520, %v519
        %v535 = vpack.c.b16 %v522, %v521
        %v536 = vpack.c.b16 %v524, %v523
        %v537 = vpack.c.b16 %v526, %v525
        %v538 = vpack.c.b16 %v528, %v527
        %v539 = vpack.c.b16 %v530, %v529
        %v540 = vpack.c.b16 %v532, %v531
        %549 = vmatprep.subr.bf16.mxu0 0
        %550 = vmatpush1.bf16.msra.mxu0 %v533
        %551 = vmatprep.subr.bf16.mxu0 0
        %552 = vmatpush1.bf16.msra.mxu0 %v534
        %553 = vmatprep.subr.bf16.mxu0 0
        %554 = vmatpush1.bf16.msra.mxu0 %v535
        %555 = vmatprep.subr.bf16.mxu0 0
        %556 = vmatpush1.bf16.msra.mxu0 %v536
        %557 = vmatprep.subr.bf16.mxu0 0
        %558 = vmatpush1.bf16.msra.mxu0 %v537
        %559 = vmatprep.subr.bf16.mxu0 0
        %560 = vmatpush1.bf16.msra.mxu0 %v538
        %561 = vmatprep.subr.bf16.mxu0 0
        %562 = vmatpush1.bf16.msra.mxu0 %v539
        %563 = vmatprep.subr.bf16.mxu0 0
        %564 = vmatpush1.bf16.msra.mxu0 %v540
        %565 = vmatprep.subr.bf16.mxu0 0
        %566 = vmatpush1.bf16.msra.mxu0 0
        %567 = vmatprep.subr.bf16.mxu0 0
        %568 = vmatpush1.bf16.msra.mxu0 0
        %569 = vmatprep.subr.bf16.mxu0 0
        %570 = vmatpush1.bf16.msra.mxu0 0
        %571 = vmatprep.subr.bf16.mxu0 0
        %572 = vmatpush1.bf16.msra.mxu0 0
        %573 = vmatprep.subr.bf16.mxu0 0
        %574 = vmatpush1.bf16.msra.mxu0 0
        %575 = vmatprep.subr.bf16.mxu0 0
        %576 = vmatpush1.bf16.msra.mxu0 0
        %577 = vmatprep.subr.bf16.mxu0 0
        %578 = vmatpush1.bf16.msra.mxu0 0
        %579 = vmatprep.subr.bf16.mxu0 0
        %580 = vmatpush1.bf16.msra.mxu0 0
        %581 = vmatprep.mubr.bf16.mxu0 0
        %582 = vmatmul.mubr.bf16.gmra.mrb[0].mxu0 %v458
        %v583 = vpop.f32.mrb[0].mxu0
        %v584 = vadd.f32 %v499, %v583
        %v585 = vpop.f32.mrb[0].mxu0
        %v586 = vpop.f32.mrb[0].mxu0
        %v587 = vadd.f32 %v499, %v586
        %v588 = vpop.f32.mrb[0].mxu0
        %589 = vmatprep.mubr.bf16.mxu0 0
        %590 = vmatmul.mubr.bf16.gmra.mrb[0].mxu0 %v459
        %v591 = vpop.f32.mrb[0].mxu0
        %v592 = vadd.f32 %v499, %v591
        %v593 = vpop.f32.mrb[0].mxu0
        %v594 = vpop.f32.mrb[0].mxu0
        %v595 = vadd.f32 %v499, %v594
        %v596 = vpop.f32.mrb[0].mxu0
        %597 = vdwg.mxu0
        %v598 = vpack.c.bf16 %v587, %v584
        %v599 = vpack.c.bf16 %v595, %v592
        %v602 = vunpack.c.l.b16 %v598
        %v603 = vunpack.c.h.b16 %v598
        %v604 = vunpack.c.l.b16 %v599
        %v605 = vunpack.c.h.b16 %v599
        %v606 = vpack.c.b16 %v602, %v602
        %v607 = vpack.c.b16 %v603, %v603
        %v608 = vpack.c.b16 %v604, %v604
        %v609 = vpack.c.b16 %v605, %v605
        %614 = vst [vmem:[%s302] sm:$0xf] %v606
        %615 = vst [vmem:[%s302 + $0x4] sm:$0xf] %v607
        %616 = vst [vmem:[%s302 + $0x8] sm:$0xf] %v608
        %617 = vst [vmem:[%s302 + $0xc] sm:$0xf] %v609
        %s618 = sand.u32 %s146, 1
        %s619 = scalar_lea.sflag [#allocation4], %s618
        %s620 = sand.u32 %s146, 1
        %s621 = smul.addr %s620, 16
        %s622 = scalar_lea.vmem [#allocation8], %s621
        %s623 = sand.u32 %s172, 1
        %s624 = scalar_lea.sflag [#allocation10], %s623
        %s625 = sand.u32 %s172, 1
        %s626 = smul.addr %s625, 16
        %s627 = scalar_lea.vmem [#allocation9], %s626
        // Predicated region
        $region53: #{tpu_custom_call.1} parent=39 // pred_check
          %p628 = pneg %p156
        $region54: #{tpu_custom_call.1} parent=39 // pred_check_branch
          %630 = sbr.rel (%p628) target = $region56
        $region55: #{tpu_custom_call.1} parent=39 // pred_region
          %s631 = smul.u32 4, %s28
          %s633 = ssub.s32 256, 256
          %634 = vsyncadd %s619, %s633
          %s635 = smul.addr %s631, 64
          %s636 = scalar_lea.hbm %s5, %s635
          %s637 = sshll.u32 %s622, 4
          %s638 = int_to_ptr.vmem [resolvable:$true] %s637
          %643 = dma.vmem_to_hbm [thread:$0]  %s638, 256, %s636, %s619, 64, 64, 4
        $region56: #{tpu_custom_call.1} parent=39 // pred_fallthru
          _
        // Predicated region
        $region57: #{tpu_custom_call.1} parent=39 // pred_check
          %p644 = pneg %p182
        $region58: #{tpu_custom_call.1} parent=39 // pred_check_branch
          %646 = sbr.rel (%p644) target = $region60
        $region59: #{tpu_custom_call.1} parent=39 // pred_region
          %s647 = smul.u32 4, %s28
          %s649 = ssub.s32 256, 256
          %650 = vsyncadd %s624, %s649
          %s651 = smul.addr %s647, 64
          %s652 = scalar_lea.hbm %s6, %s651
          %s653 = sshll.u32 %s627, 4
          %s654 = int_to_ptr.vmem [resolvable:$true] %s653
          %659 = dma.vmem_to_hbm [thread:$0]  %s654, 256, %s652, %s624, 64, 64, 4
        $region60: #{tpu_custom_call.1} parent=39 // pred_fallthru
          _
      $region40: #{tpu_custom_call.1} parent=5 // pred_fallthru
        _
      %p660 = scmp.le.s32.totalorder 2, %s23
      // Predicated region
      $region61: #{tpu_custom_call.1} parent=5 // pred_check
        %p661 = pneg %p660
      $region62: #{tpu_custom_call.1} parent=5 // pred_check_branch
        %663 = sbr.rel (%p661) target = $region64
      $region63: #{tpu_custom_call.1} parent=5 // pred_region
        %s664 = ssub.s32 %s23, 2
        // Predicated region
        $region65: #{tpu_custom_call.1} parent=63 // pred_check
          %p665 = pneg %p162
        $region66: #{tpu_custom_call.1} parent=63 // pred_check_branch
          %667 = sbr.rel (%p665) target = $region68
        $region67: #{tpu_custom_call.1} parent=63 // pred_region
          %s668 = sand.u32 %s147, 1
          %s669 = scalar_lea.sflag [#allocation4], %s668
          %s670 = sand.u32 %s147, 1
          %s671 = smul.addr %s670, 16
          %s672 = scalar_lea.vmem [#allocation8], %s671
          %673 = dma.done %s669, 256
        $region68: #{tpu_custom_call.1} parent=63 // pred_fallthru
          _
        // Predicated region
        $region69: #{tpu_custom_call.1} parent=63 // pred_check
          %p674 = pneg %p188
        $region70: #{tpu_custom_call.1} parent=63 // pred_check_branch
          %676 = sbr.rel (%p674) target = $region72
        $region71: #{tpu_custom_call.1} parent=63 // pred_region
          %s677 = sand.u32 %s173, 1
          %s678 = scalar_lea.sflag [#allocation10], %s677
          %s679 = sand.u32 %s173, 1
          %s680 = smul.addr %s679, 16
          %s681 = scalar_lea.vmem [#allocation9], %s680
          %682 = dma.done %s678, 256
        $region72: #{tpu_custom_call.1} parent=63 // pred_fallthru
          _
      $region64: #{tpu_custom_call.1} parent=5 // pred_fallthru
        _
    $region6: #{tpu_custom_call.1} parent=1 // loop_footer
      %s27 = sadd.s32 1, %s23
    $region7: #{tpu_custom_call.1} parent=1 // loop_footer_branch
      %22 = sbr.rel target = $region3
    $region8: #{tpu_custom_call.1} parent=1 // loop_exit
      _
    %683 = vsyncpa [#allocation3], 1
    %s684 = scalar_lea.sflag [#allocation3], 1
    %685 = vsyncpa %s684, 1
    %686 = vsyncpa [#allocation6], 1
    %687 = vsyncpa [#allocation4], 1
    %s688 = scalar_lea.sflag [#allocation4], 1
    %689 = vsyncpa %s688, 1
    %690 = vsyncpa [#allocation10], 1
    %s691 = scalar_lea.sflag [#allocation10], 1
    %692 = vsyncpa %s691, 1

</llo_original>
